<compile_context>
chip_gen: v7x
topology: tpu7x:2x2x1
jax: 0.10.0
libtpu: 0.0.40
codegen_flags: <defaults>
</compile_context>

<pallas_src>
import functools

import jax
import jax.numpy as jnp
from jax.experimental import pallas as pl
from jax.experimental.pallas import tpu as pltpu


def _round_up(x, m):
    return (x + m - 1) // m * m


def _actor_critic_kernel(state_ref, action_ref, w1_ref, w2_ref, w3_ref,
                         bias_ref, out_ref, *, action_dim, value_col):
    """Fused actor+critic MLP on one batch tile.

    Packed layout (built by pack_params):
      w1: [S, WB]   cols [0,H) actor L1, [H,2H) critic L1, rest 0
      w2: [WB, WB]  block-diag(actor L2, critic L2), rest 0
      w3: [WB, WB]  rows [0,H) x cols [0,A) actor L3, rows [H,2H) x col A critic L3
      bias slab rows 0/1/2 = fused biases of layers 1/2/3 (always f32)
      out: [TB, 8]  col 0 = log_prob(action), col 1 = state value, col 2 = entropy
    """
    w_dtype = w1_ref.dtype
    x = state_ref[...]                       # already in weight dtype (wrapper cast)

    b1 = bias_ref[0:1, :]                    # [1, WB] f32
    b2 = bias_ref[1:2, :]
    b3 = bias_ref[2:3, :]

    # --- fused actor|critic trunk: 3 MXU passes, f32 accumulation ---
    h = jnp.dot(x, w1_ref[...], preferred_element_type=jnp.float32) + b1
    h = jnp.maximum(h, 0.0)
    h = jnp.dot(h.astype(w_dtype), w2_ref[...],
                preferred_element_type=jnp.float32) + b2
    h = jnp.maximum(h, 0.0)
    out3 = jnp.dot(h.astype(w_dtype), w3_ref[...],
                   preferred_element_type=jnp.float32) + b3
    # out3 cols: [0, A) = actor logits | A = state value | rest = zero padding

    col = jax.lax.broadcasted_iota(jnp.int32, out3.shape, 1)        # [TB, WB]
    is_logit = col < action_dim
    # NOTE: must stay FINITE (-1e30, not -inf): jnp.where evaluates both
    # branches, so pad lanes compute 0 * finite = 0 (safe); -inf would NaN.
    neg_big = jnp.float32(-1e30)

    # masked, numerically-stable softmax statistics over the logit columns only
    masked = jnp.where(is_logit, out3, neg_big)
    m = jnp.max(masked, axis=-1, keepdims=True)                     # [TB, 1]
    z = masked - m                                                  # pad cols ~ -1e30
    e = jnp.exp(z)                                                  # single exp; pad -> 0
    s = jnp.sum(e, axis=-1, keepdims=True)                          # [TB, 1]
    log_s = jnp.log(s)                                              # [TB, 1]

    # entropy via identity  H = log(s) - sum(e*z)/s   (no second full-width exp)
    ez = jnp.sum(jnp.where(is_logit, e * z, 0.0),
                 axis=-1, keepdims=True)                            # [TB, 1]
    ent = log_s - ez / s                                            # [TB, 1]

    # log_prob(action) = z[action] - log(s); one-hot select via iota compare
    a = action_ref[...]                                             # [TB, 1] int32
    z_a = jnp.sum(jnp.where(col == a, z, 0.0),
                  axis=-1, keepdims=True)                           # [TB, 1]
    logp = z_a - log_s                                              # [TB, 1]

    # state value: static lane slice of the fused layer-3 output (no reduction)
    val = out3[:, value_col:value_col + 1]                          # [TB, 1]

    # packed output: direct column writes, cols 0/1/2 = logp / value / entropy
    out_ref[:, 0:1] = logp
    out_ref[:, 1:2] = val
    out_ref[:, 2:3] = ent
    out_ref[:, 3:] = jnp.zeros((out_ref.shape[0], out_ref.shape[1] - 3),
                               out_ref.dtype)


def pack_params(raw_params, weights_dtype=jnp.bfloat16):
    """Fuse actor/critic per-layer params into 3 weights + 1 bias slab.

    Done once, outside the per-call path.  bf16 weights (default) hit the
    native MXU rate on v5e/v6e/v7x; accumulation and all softmax/entropy math
    stays f32 inside the kernel.  Pass weights_dtype=jnp.float32 for
    bit-accurate parity with an f32 reference.
    """
    (w1, b1, w2, b2, w3, b3, v1, c1, v2, c2, v3, c3) = raw_params
    S, H = w1.shape
    A = w3.shape[1]
    WB = _round_up(max(2 * H, A + 1), 128)          # lane-dense fused width

    w1p = (jnp.zeros((S, WB), jnp.float32)
           .at[:, :H].set(w1).at[:, H:2 * H].set(v1))
    w2p = (jnp.zeros((WB, WB), jnp.float32)
           .at[:H, :H].set(w2).at[H:2 * H, H:2 * H].set(v2))
    w3p = (jnp.zeros((WB, WB), jnp.float32)
           .at[:H, :A].set(w3).at[H:2 * H, A:A + 1].set(v3))
    bslab = (jnp.zeros((8, WB), jnp.float32)        # 8 rows for sublane alignment
             .at[0, :H].set(b1).at[0, H:2 * H].set(c1)
             .at[1, :H].set(b2).at[1, H:2 * H].set(c2)
             .at[2, :A].set(b3).at[2, A].set(c3[0]))

    return (w1p.astype(weights_dtype), w2p.astype(weights_dtype),
            w3p.astype(weights_dtype), bslab)


@functools.partial(jax.jit, static_argnames=("action_dim", "block_b"))
def actor_critic_evaluate(state, action, w1p, w2p, w3p, bslab, *,
                          action_dim, block_b=2048):
    """Pallas implementation of ActorCritic.evaluate(state, action).

    Returns (action_logprobs[B], state_value[B], dist_entropy[B]).
    """
    B, S = state.shape
    WB = w1p.shape[1]
    OUT_W = 8                               # cols: 0=logp, 1=value, 2=entropy

    assert block_b % 8 == 0
    if B > block_b:
        TB = block_b                        # large batch: tile at block_b
    elif B >= 1024:
        # moderate batch: force >= 2 grid steps so the "parallel" batch axis
        # can shard across the two TensorCores on v7x (free on v5e/v6e).
        TB = _round_up((B + 1) // 2, 8)
    else:
        TB = B                              # small batch: single full-array block
    B_pad = _round_up(B, TB)

    state_in = state.astype(w1p.dtype)      # cast once, before the DMA
    action_in = action.reshape(B, 1).astype(jnp.int32)
    if B_pad != B:
        state_in = jnp.pad(state_in, ((0, B_pad - B), (0, 0)))
        action_in = jnp.pad(action_in, ((0, B_pad - B), (0, 0)))

    kernel = functools.partial(_actor_critic_kernel,
                               action_dim=action_dim, value_col=action_dim)

    out = pl.pallas_call(
        kernel,
        out_shape=jax.ShapeDtypeStruct((B_pad, OUT_W), jnp.float32),
        grid_spec=pltpu.PrefetchScalarGridSpec(
            num_scalar_prefetch=0,
            grid=(B_pad // TB,),
            in_specs=[
                pl.BlockSpec((TB, S), lambda i: (i, 0)),     # state tile
                pl.BlockSpec((TB, 1), lambda i: (i, 0)),     # action tile
                pl.BlockSpec((S, WB), lambda i: (0, 0)),     # fused L1 (resident)
                pl.BlockSpec((WB, WB), lambda i: (0, 0)),    # fused L2 (resident)
                pl.BlockSpec((WB, WB), lambda i: (0, 0)),    # fused L3 (resident)
                pl.BlockSpec((8, WB), lambda i: (0, 0)),     # bias slab (resident)
            ],
            out_specs=pl.BlockSpec((TB, OUT_W), lambda i: (i, 0)),
        ),
        compiler_params=pltpu.CompilerParams(
            # batch axis is embarrassingly parallel -> megacore sharding on v7x
            dimension_semantics=("parallel",),
            # cover the larger TB=2048 working set; stays under v7x's 64 MiB
            vmem_limit_bytes=48 * 1024 * 1024),
    )(state_in, action_in, w1p, w2p, w3p, bslab)

    logp = out[:B, 0]
    val = out[:B, 1]
    ent = out[:B, 2]
    return logp, val, ent


def init_params(key, state_dim, action_dim, n_latent_var):
    """Deterministic init mimicking nn.Linear U(-1/sqrt(fan_in), +1/sqrt(fan_in))."""
    def linear(k, fan_in, fan_out):
        kw, kb = jax.random.split(k)
        bound = 1.0 / jnp.sqrt(fan_in)
        w = jax.random.uniform(kw, (fan_in, fan_out), jnp.float32, -bound, bound)
        b = jax.random.uniform(kb, (fan_out,), jnp.float32, -bound, bound)
        return w, b

    ks = jax.random.split(key, 6)
    w1, b1 = linear(ks[0], state_dim, n_latent_var)
    w2, b2 = linear(ks[1], n_latent_var, n_latent_var)
    w3, b3 = linear(ks[2], n_latent_var, action_dim)
    v1, c1 = linear(ks[3], state_dim, n_latent_var)
    v2, c2 = linear(ks[4], n_latent_var, n_latent_var)
    v3, c3 = linear(ks[5], n_latent_var, 1)
    return (w1, b1, w2, b2, w3, b3, v1, c1, v2, c2, v3, c3)


def _reference_evaluate(state, action, raw_params):
    """Pure-JAX reference of the PyTorch evaluate() for a sanity check."""
    (w1, b1, w2, b2, w3, b3, v1, c1, v2, c2, v3, c3) = raw_params
    h = jax.nn.relu(state @ w1 + b1)
    h = jax.nn.relu(h @ w2 + b2)
    logits = h @ w3 + b3
    log_probs = jax.nn.log_softmax(logits, axis=-1)
    probs = jnp.exp(log_probs)
    logp = jnp.take_along_axis(log_probs, action[:, None], axis=-1)[:, 0]
    ent = -jnp.sum(probs * log_probs, axis=-1)
    g = jax.nn.relu(state @ v1 + c1)
    g = jax.nn.relu(g @ v2 + c2)
    val = (g @ v3 + c3)[:, 0]
    return logp, val, ent


if __name__ == "__main__":
    # Small shapes consistent with the module's forward pass.
    B, state_dim, action_dim, n_latent_var = 8, 16, 8, 32

    key = jax.random.PRNGKey(0)
    k_state, k_action, k_params = jax.random.split(key, 3)

    state = jax.random.normal(k_state, (B, state_dim), jnp.float32)
    action = jax.random.randint(k_action, (B,), 0, action_dim, jnp.int32)

    raw = init_params(k_params, state_dim, action_dim, n_latent_var)
    ref_logp, ref_val, ref_ent = _reference_evaluate(state, action, raw)

    # --- f32 weights: bit-level parity check of the kernel math -------------
    w1p, w2p, w3p, bslab = pack_params(raw, weights_dtype=jnp.float32)
    logp, val, ent = actor_critic_evaluate(state, action, w1p, w2p, w3p, bslab,
                                           action_dim=action_dim)
    jax.block_until_ready((logp, val, ent))
    assert jnp.allclose(logp, ref_logp, rtol=1e-5, atol=1e-5)
    assert jnp.allclose(val, ref_val, rtol=1e-5, atol=1e-5)
    assert jnp.allclose(ent, ref_ent, rtol=1e-5, atol=1e-5)

    # --- bf16 weights (DEFAULT / fast path): loose tolerance, expected
    #     quantization error only ---------------------------------------------
    w1b, w2b, w3b, bslabb = pack_params(raw)          # bf16 default
    logp_b, val_b, ent_b = actor_critic_evaluate(state, action,
                                                 w1b, w2b, w3b, bslabb,
                                                 action_dim=action_dim)
    jax.block_until_ready((logp_b, val_b, ent_b))
    assert jnp.allclose(logp_b, ref_logp, rtol=5e-2, atol=5e-2)
    assert jnp.allclose(val_b, ref_val, rtol=5e-2, atol=5e-2)
    assert jnp.allclose(ent_b, ref_ent, rtol=5e-2, atol=5e-2)

    print("KERNEL_OK")
</pallas_src>

<mosaic_0001>
module attributes {stable_mosaic.version = 11 : i64} {
  func.func @_actor_critic_kernel(%arg0: i32, %arg1: memref<8x16xf32, #tpu.memory_space<vmem>>, %arg2: memref<8x1xi32, #tpu.memory_space<vmem>>, %arg3: memref<16x128xf32, #tpu.memory_space<vmem>>, %arg4: memref<128x128xf32, #tpu.memory_space<vmem>>, %arg5: memref<128x128xf32, #tpu.memory_space<vmem>>, %arg6: memref<8x128xf32, #tpu.memory_space<vmem>>, %arg7: memref<8x8xf32, #tpu.memory_space<vmem>>) attributes {dimension_semantics = [#tpu.dimension_semantics<parallel>], iteration_bounds = array<i64: 1>, scalar_prefetch = 0 : i64, scratch_operands = 0 : i64, tpu.core_type = #tpu.core_type<tc>, window_params = [{transform_indices = @transform_0, window_bounds = array<i64: 8, 16>}, {transform_indices = @transform_1, window_bounds = array<i64: 8, 1>}, {pipeline_mode = #tpu.pipeline_mode<synchronous>, transform_indices = @transform_2, window_bounds = array<i64: 16, 128>}, {pipeline_mode = #tpu.pipeline_mode<synchronous>, transform_indices = @transform_3, window_bounds = array<i64: 128, 128>}, {pipeline_mode = #tpu.pipeline_mode<synchronous>, transform_indices = @transform_4, window_bounds = array<i64: 128, 128>}, {pipeline_mode = #tpu.pipeline_mode<synchronous>, transform_indices = @transform_5, window_bounds = array<i64: 8, 128>}, {transform_indices = @transform_6, window_bounds = array<i64: 8, 8>}]} {
    %c0 = arith.constant 0 : index
    %c0_0 = arith.constant 0 : index
    %0 = vector.load %arg1[%c0, %c0_0] : memref<8x16xf32, #tpu.memory_space<vmem>>, vector<8x16xf32>
    %c0_1 = arith.constant 0 : index
    %c0_2 = arith.constant 0 : index
    %1 = vector.load %arg6[%c0_1, %c0_2] : memref<8x128xf32, #tpu.memory_space<vmem>>, vector<1x128xf32>
    %c1 = arith.constant 1 : index
    %c0_3 = arith.constant 0 : index
    %2 = vector.load %arg6[%c1, %c0_3] : memref<8x128xf32, #tpu.memory_space<vmem>>, vector<1x128xf32>
    %c2 = arith.constant 2 : index
    %c0_4 = arith.constant 0 : index
    %3 = vector.load %arg6[%c2, %c0_4] : memref<8x128xf32, #tpu.memory_space<vmem>>, vector<1x128xf32>
    %c0_5 = arith.constant 0 : index
    %c0_6 = arith.constant 0 : index
    %4 = vector.load %arg3[%c0_5, %c0_6] : memref<16x128xf32, #tpu.memory_space<vmem>>, vector<16x128xf32>
    %cst = arith.constant dense<0.000000e+00> : vector<8x128xf32>
    %5 = tpu.matmul %0, %4, %cst {dimension_numbers = #tpu.dot_dimension_numbers<[1], [0], [0], [1], [0, 0, 1, 1], [], []>} : vector<8x16xf32>, vector<16x128xf32>, vector<8x128xf32> -> vector<8x128xf32>
    %6 = vector.broadcast %1 : vector<1x128xf32> to vector<8x128xf32>
    %7 = arith.addf %5, %6 : vector<8x128xf32>
    %cst_7 = arith.constant 0.000000e+00 : f32
    %8 = vector.broadcast %cst_7 : f32 to vector<8x128xf32>
    %9 = arith.maximumf %7, %8 : vector<8x128xf32>
    %c0_8 = arith.constant 0 : index
    %c0_9 = arith.constant 0 : index
    %10 = vector.load %arg4[%c0_8, %c0_9] : memref<128x128xf32, #tpu.memory_space<vmem>>, vector<128x128xf32>
    %cst_10 = arith.constant dense<0.000000e+00> : vector<8x128xf32>
    %11 = tpu.matmul %9, %10, %cst_10 {dimension_numbers = #tpu.dot_dimension_numbers<[1], [0], [0], [1], [0, 0, 1, 1], [], []>} : vector<8x128xf32>, vector<128x128xf32>, vector<8x128xf32> -> vector<8x128xf32>
    %12 = vector.broadcast %2 : vector<1x128xf32> to vector<8x128xf32>
    %13 = arith.addf %11, %12 : vector<8x128xf32>
    %cst_11 = arith.constant 0.000000e+00 : f32
    %14 = vector.broadcast %cst_11 : f32 to vector<8x128xf32>
    %15 = arith.maximumf %13, %14 : vector<8x128xf32>
    %c0_12 = arith.constant 0 : index
    %c0_13 = arith.constant 0 : index
    %16 = vector.load %arg5[%c0_12, %c0_13] : memref<128x128xf32, #tpu.memory_space<vmem>>, vector<128x128xf32>
    %cst_14 = arith.constant dense<0.000000e+00> : vector<8x128xf32>
    %17 = tpu.matmul %15, %16, %cst_14 {dimension_numbers = #tpu.dot_dimension_numbers<[1], [0], [0], [1], [0, 0, 1, 1], [], []>} : vector<8x128xf32>, vector<128x128xf32>, vector<8x128xf32> -> vector<8x128xf32>
    %18 = vector.broadcast %3 : vector<1x128xf32> to vector<8x128xf32>
    %19 = arith.addf %17, %18 : vector<8x128xf32>
    %20 = tpu.iota {dimensions = array<i32: 1>} : vector<8x128xi32>
    %c8_i32 = arith.constant 8 : i32
    %21 = vector.broadcast %c8_i32 : i32 to vector<8x128xi32>
    %22 = arith.cmpi slt, %20, %21 : vector<8x128xi32>
    %cst_15 = arith.constant -1.000000e+30 : f32
    %23 = vector.broadcast %cst_15 : f32 to vector<8x128xf32>
    %24 = arith.select %22, %19, %23 : vector<8x128xi1>, vector<8x128xf32>
    %cst_16 = arith.constant dense<0xFF800000> : vector<8xf32>
    %25 = vector.multi_reduction <maximumf>, %24, %cst_16 [1] : vector<8x128xf32> to vector<8xf32>
    %26 = vector.shape_cast %25 : vector<8xf32> to vector<8x1xf32>
    %27 = vector.broadcast %26 : vector<8x1xf32> to vector<8x128xf32>
    %28 = arith.subf %24, %27 : vector<8x128xf32>
    %29 = math.exp %28 : vector<8x128xf32>
    %cst_17 = arith.constant dense<0.000000e+00> : vector<8xf32>
    %30 = vector.multi_reduction <add>, %29, %cst_17 [1] : vector<8x128xf32> to vector<8xf32>
    %31 = vector.shape_cast %30 : vector<8xf32> to vector<8x1xf32>
    %32 = math.log %31 : vector<8x1xf32>
    %33 = arith.mulf %29, %28 : vector<8x128xf32>
    %cst_18 = arith.constant 0.000000e+00 : f32
    %34 = vector.broadcast %cst_18 : f32 to vector<8x128xf32>
    %35 = arith.select %22, %33, %34 : vector<8x128xi1>, vector<8x128xf32>
    %cst_19 = arith.constant dense<0.000000e+00> : vector<8xf32>
    %36 = vector.multi_reduction <add>, %35, %cst_19 [1] : vector<8x128xf32> to vector<8xf32>
    %37 = vector.shape_cast %36 : vector<8xf32> to vector<8x1xf32>
    %38 = arith.divf %37, %31 : vector<8x1xf32>
    %39 = arith.subf %32, %38 : vector<8x1xf32>
    %c0_20 = arith.constant 0 : index
    %c0_21 = arith.constant 0 : index
    %40 = vector.load %arg2[%c0_20, %c0_21] : memref<8x1xi32, #tpu.memory_space<vmem>>, vector<8x1xi32>
    %41 = vector.broadcast %40 : vector<8x1xi32> to vector<8x128xi32>
    %42 = arith.cmpi eq, %20, %41 : vector<8x128xi32>
    %cst_22 = arith.constant 0.000000e+00 : f32
    %43 = vector.broadcast %cst_22 : f32 to vector<8x128xf32>
    %44 = arith.select %42, %28, %43 : vector<8x128xi1>, vector<8x128xf32>
    %cst_23 = arith.constant dense<0.000000e+00> : vector<8xf32>
    %45 = vector.multi_reduction <add>, %44, %cst_23 [1] : vector<8x128xf32> to vector<8xf32>
    %46 = vector.shape_cast %45 : vector<8xf32> to vector<8x1xf32>
    %47 = arith.subf %46, %32 : vector<8x1xf32>
    %48 = vector.extract_strided_slice %19 {offsets = [0, 8], sizes = [8, 1], strides = [1, 1]} : vector<8x128xf32> to vector<8x1xf32>
    %c0_24 = arith.constant 0 : index
    %c0_25 = arith.constant 0 : index
    %49 = vector.load %arg7[%c0_24, %c0_25] : memref<8x8xf32, #tpu.memory_space<vmem>>, vector<8x1xf32>
    tpu.vector_store %arg7[%c0_24, %c0_25], %47 {strides = array<i32>} : memref<8x8xf32, #tpu.memory_space<vmem>>, vector<8x1xf32>,
    %c0_26 = arith.constant 0 : index
    %c1_27 = arith.constant 1 : index
    %50 = vector.load %arg7[%c0_26, %c1_27] : memref<8x8xf32, #tpu.memory_space<vmem>>, vector<8x1xf32>
    tpu.vector_store %arg7[%c0_26, %c1_27], %48 {strides = array<i32>} : memref<8x8xf32, #tpu.memory_space<vmem>>, vector<8x1xf32>,
    %c0_28 = arith.constant 0 : index
    %c2_29 = arith.constant 2 : index
    %51 = vector.load %arg7[%c0_28, %c2_29] : memref<8x8xf32, #tpu.memory_space<vmem>>, vector<8x1xf32>
    tpu.vector_store %arg7[%c0_28, %c2_29], %39 {strides = array<i32>} : memref<8x8xf32, #tpu.memory_space<vmem>>, vector<8x1xf32>,
    %cst_30 = arith.constant 0.000000e+00 : f32
    %52 = vector.broadcast %cst_30 : f32 to vector<8x5xf32>
    %c0_31 = arith.constant 0 : index
    %c3 = arith.constant 3 : index
    %53 = vector.load %arg7[%c0_31, %c3] : memref<8x8xf32, #tpu.memory_space<vmem>>, vector<8x5xf32>
    tpu.vector_store %arg7[%c0_31, %c3], %52 {strides = array<i32>} : memref<8x8xf32, #tpu.memory_space<vmem>>, vector<8x5xf32>,
    return
  }
  func.func @transform_0(%arg0: i32) -> (i32, i32) {
    %c0_i32 = arith.constant 0 : i32
    %c0_i32_0 = arith.constant 0 : i32
    return %arg0, %c0_i32 : i32, i32
  }
  func.func @transform_1(%arg0: i32) -> (i32, i32) {
    %c0_i32 = arith.constant 0 : i32
    %c0_i32_0 = arith.constant 0 : i32
    return %arg0, %c0_i32 : i32, i32
  }
  func.func @transform_2(%arg0: i32) -> (i32, i32) {
    %c0_i32 = arith.constant 0 : i32
    %c0_i32_0 = arith.constant 0 : i32
    %c0_i32_1 = arith.constant 0 : i32
    return %c0_i32, %c0_i32_0 : i32, i32
  }
  func.func @transform_3(%arg0: i32) -> (i32, i32) {
    %c0_i32 = arith.constant 0 : i32
    %c0_i32_0 = arith.constant 0 : i32
    %c0_i32_1 = arith.constant 0 : i32
    return %c0_i32, %c0_i32_0 : i32, i32
  }
  func.func @transform_4(%arg0: i32) -> (i32, i32) {
    %c0_i32 = arith.constant 0 : i32
    %c0_i32_0 = arith.constant 0 : i32
    %c0_i32_1 = arith.constant 0 : i32
    return %c0_i32, %c0_i32_0 : i32, i32
  }
  func.func @transform_5(%arg0: i32) -> (i32, i32) {
    %c0_i32 = arith.constant 0 : i32
    %c0_i32_0 = arith.constant 0 : i32
    %c0_i32_1 = arith.constant 0 : i32
    return %c0_i32, %c0_i32_0 : i32, i32
  }
  func.func @transform_6(%arg0: i32) -> (i32, i32) {
    %c0_i32 = arith.constant 0 : i32
    %c0_i32_0 = arith.constant 0 : i32
    return %arg0, %c0_i32 : i32, i32
  }
}

</mosaic_0001>

<llo_original>
// kernel: actor_critic_evaluate.1
$region0: #{actor_critic_evaluate.1}
  #allocation0 [shape = 'u32[]', space=smem, size = 0x4, offset = 0x4, fixed_abs, tag = 'smem constant byte address 0x4 - core index']
  #allocation1 [shape = 'u32[144,128]{1,0:T(1,128)}', space=vmem, size = 0x12000, scoped, tag = 'internal scratch']
  %s0 = inlined_call_operand.hbm [shape: f32[8,16], index: 0, kind: input, shape index: {}]
  %s1 = inlined_call_operand.vmem [shape: s32[8,1], index: 1, kind: input, shape index: {}]
  %s2 = inlined_call_operand.vmem [shape: f32[16,128], index: 2, kind: input, shape index: {}]
  %s3 = inlined_call_operand.hbm [shape: f32[128,128], index: 3, kind: input, shape index: {}]
  %s4 = inlined_call_operand.hbm [shape: f32[128,128], index: 4, kind: input, shape index: {}]
  %s5 = inlined_call_operand.vmem [shape: f32[8,128], index: 5, kind: input, shape index: {}]
  %s6 = inlined_call_operand.vmem [shape: f32[8,8], index: 6, kind: output, shape index: {}]
  %s7 = sld [smem:[#allocation0]]
  $region46: #{actor_critic_evaluate.1} parent=0
    _
  %s9 = ssub.s32 1, %s7
  %s10 = scalar_select 0, %s9, %s7
  $region1: #{actor_critic_evaluate.1} parent=0
    #allocation2 [shape = 'u8[4096]{0}', space=vmem, size = 0x1000, scoped, tag = 'input window, operand 0, single buffered']
    #allocation3 [shape = 's32[1]{0}', space=sflag, size = 0x4, scoped, tag = 'scoped memory for actor_critic_evaluate.1']
    #allocation4 [shape = 'u8[65536]{0}', space=vmem, size = 0x10000, scoped, tag = 'input window, operand 3, single buffered']
    #allocation5 [shape = 's32[1]{0}', space=sflag, size = 0x4, scoped, tag = 'scoped memory for actor_critic_evaluate.1']
    #allocation6 [shape = 'u8[65536]{0}', space=vmem, size = 0x10000, scoped, tag = 'input window, operand 4, single buffered']
    %11 = vsyncpa [#allocation3], 0
    %12 = vsyncpa [#allocation5], 0
    // Predicated region
    $region2: #{actor_critic_evaluate.1} parent=1 // pred_check
      _
    $region3: #{actor_critic_evaluate.1} parent=1 // pred_check_branch
      %14 = sbr.rel (0) target = $region5
    $region4: #{actor_critic_evaluate.1} parent=1 // pred_region
      %s16 = ssub.s32 128, 128
      %17 = vsyncadd [#allocation3], %s16
      %s19 = sshll.u32 [#allocation2], 4
      %s20 = int_to_ptr.vmem [resolvable:$true] %s19
      %22 = dma.hbm_to_vmem [thread:$0]  %s0, 128, %s20, [#allocation3]
    $region5: #{actor_critic_evaluate.1} parent=1 // pred_fallthru
      _
    // Predicated region
    $region6: #{actor_critic_evaluate.1} parent=1 // pred_check
      _
    $region7: #{actor_critic_evaluate.1} parent=1 // pred_check_branch
      %24 = sbr.rel (0) target = $region9
    $region8: #{actor_critic_evaluate.1} parent=1 // pred_region
      _
    $region9: #{actor_critic_evaluate.1} parent=1 // pred_fallthru
      _
    // Predicated region
    $region10: #{actor_critic_evaluate.1} parent=1 // pred_check
      _
    $region11: #{actor_critic_evaluate.1} parent=1 // pred_check_branch
      %26 = sbr.rel (0) target = $region13
    $region12: #{actor_critic_evaluate.1} parent=1 // pred_region
      _
    $region13: #{actor_critic_evaluate.1} parent=1 // pred_fallthru
      _
    // Predicated region
    $region14: #{actor_critic_evaluate.1} parent=1 // pred_check
      _
    $region15: #{actor_critic_evaluate.1} parent=1 // pred_check_branch
      %28 = sbr.rel (0) target = $region17
    $region16: #{actor_critic_evaluate.1} parent=1 // pred_region
      %s30 = ssub.s32 2048, 2048
      %31 = vsyncadd [#allocation5], %s30
      %s32 = sshll.u32 [#allocation4], 4
      %s33 = int_to_ptr.vmem [resolvable:$true] %s32
      %38 = dma.hbm_to_vmem [thread:$0]  %s3, 2048, %s33, [#allocation5], 128, 128, 8
    $region17: #{actor_critic_evaluate.1} parent=1 // pred_fallthru
      _
    // Predicated region
    $region18: #{actor_critic_evaluate.1} parent=1 // pred_check
      _
    $region19: #{actor_critic_evaluate.1} parent=1 // pred_check_branch
      %40 = sbr.rel (0) target = $region21
    $region20: #{actor_critic_evaluate.1} parent=1 // pred_region
      %s42 = ssub.s32 2048, 2048
      %43 = vsyncadd [#allocation5], %s42
      %s44 = sshll.u32 [#allocation6], 4
      %s45 = int_to_ptr.vmem [resolvable:$true] %s44
      %50 = dma.hbm_to_vmem [thread:$0]  %s4, 2048, %s45, [#allocation5], 128, 128, 8
    $region21: #{actor_critic_evaluate.1} parent=1 // pred_fallthru
      _
    // Predicated region
    $region22: #{actor_critic_evaluate.1} parent=1 // pred_check
      _
    $region23: #{actor_critic_evaluate.1} parent=1 // pred_check_branch
      %52 = sbr.rel (0) target = $region25
    $region24: #{actor_critic_evaluate.1} parent=1 // pred_region
      _
    $region25: #{actor_critic_evaluate.1} parent=1 // pred_fallthru
      _
    // Predicated region
    $region26: #{actor_critic_evaluate.1} parent=1 // pred_check
      _
    $region27: #{actor_critic_evaluate.1} parent=1 // pred_check_branch
      %54 = sbr.rel (0) target = $region29
    $region28: #{actor_critic_evaluate.1} parent=1 // pred_region
      %55 = dma.done [#allocation3], 128
    $region29: #{actor_critic_evaluate.1} parent=1 // pred_fallthru
      _
    // Predicated region
    $region30: #{actor_critic_evaluate.1} parent=1 // pred_check
      _
    $region31: #{actor_critic_evaluate.1} parent=1 // pred_check_branch
      %57 = sbr.rel (0) target = $region33
    $region32: #{actor_critic_evaluate.1} parent=1 // pred_region
      %58 = dma.done [#allocation5], 2048
    $region33: #{actor_critic_evaluate.1} parent=1 // pred_fallthru
      _
    // Predicated region
    $region34: #{actor_critic_evaluate.1} parent=1 // pred_check
      _
    $region35: #{actor_critic_evaluate.1} parent=1 // pred_check_branch
      %60 = sbr.rel (0) target = $region37
    $region36: #{actor_critic_evaluate.1} parent=1 // pred_region
      %61 = dma.done [#allocation5], 2048
    $region37: #{actor_critic_evaluate.1} parent=1 // pred_fallthru
      _
    %v62 = vld [vmem:[#allocation2] sm:$0xff]
    %v63 = vld [vmem:[%s5] sm:$0x1]
    %v64 = vld [vmem:[%s5 + $0x1] sm:$0x1]
    %v65 = vld [vmem:[%s5 + $0x2] sm:$0x1]
    %v66 = vld [vmem:[%s2] sm:$0xff]
    %v67 = vld [vmem:[%s2 + $0x8] sm:$0xff]
    %v68 = vlaneseq
    %v69 = vshrl.u32 %v68, 7
    %v70 = vsub.s32 0, %v69
    %v71 = vrot.slane %v63, %v70
    %vm72 = vcmask 130048
    %v74 = vsel %vm72, %v62, 0
    %76 = vmatprep.subr.mxu0 0.0
    %77 = vmatpush1.msra.mxu0 %v66
    %78 = vmatprep.subr.mxu0 0.0
    %79 = vmatpush1.msra.mxu0 %v67
    %80 = vmatprep.subr.mxu0 0.0
    %81 = vmatpush1.msra.mxu0 0.0
    %82 = vmatprep.subr.mxu0 0.0
    %83 = vmatpush1.msra.mxu0 0.0
    %84 = vmatprep.subr.mxu0 0.0
    %85 = vmatpush1.msra.mxu0 0.0
    %86 = vmatprep.subr.mxu0 0.0
    %87 = vmatpush1.msra.mxu0 0.0
    %88 = vmatprep.subr.mxu0 0.0
    %89 = vmatpush1.msra.mxu0 0.0
    %90 = vmatprep.subr.mxu0 0.0
    %91 = vmatpush1.msra.mxu0 0.0
    %92 = vmatprep.subr.mxu0 0.0
    %93 = vmatpush1.msra.mxu0 0.0
    %94 = vmatprep.subr.mxu0 0.0
    %95 = vmatpush1.msra.mxu0 0.0
    %96 = vmatprep.subr.mxu0 0.0
    %97 = vmatpush1.msra.mxu0 0.0
    %98 = vmatprep.subr.mxu0 0.0
    %99 = vmatpush1.msra.mxu0 0.0
    %100 = vmatprep.subr.mxu0 0.0
    %101 = vmatpush1.msra.mxu0 0.0
    %102 = vmatprep.subr.mxu0 0.0
    %103 = vmatpush1.msra.mxu0 0.0
    %104 = vmatprep.subr.mxu0 0.0
    %105 = vmatpush1.msra.mxu0 0.0
    %106 = vmatprep.subr.mxu0 0.0
    %107 = vmatpush1.msra.mxu0 0.0
    %108 = vmatprep.subr.mxu0 0.0
    %109 = vmatpush1.msra.mxu0 0.0
    %110 = vmatprep.subr.mxu0 0.0
    %111 = vmatpush1.msra.mxu0 0.0
    %112 = vmatprep.subr.mxu0 0.0
    %113 = vmatpush1.msra.mxu0 0.0
    %114 = vmatprep.subr.mxu0 0.0
    %115 = vmatpush1.msra.mxu0 0.0
    %116 = vmatprep.subr.mxu0 0.0
    %117 = vmatpush1.msra.mxu0 0.0
    %118 = vmatprep.subr.mxu0 0.0
    %119 = vmatpush1.msra.mxu0 0.0
    %120 = vmatprep.subr.mxu0 0.0
    %121 = vmatpush1.msra.mxu0 0.0
    %122 = vmatprep.subr.mxu0 0.0
    %123 = vmatpush1.msra.mxu0 0.0
    %124 = vmatprep.subr.mxu0 0.0
    %125 = vmatpush1.msra.mxu0 0.0
    %126 = vmatprep.subr.mxu0 0.0
    %127 = vmatpush1.msra.mxu0 0.0
    %128 = vmatprep.subr.mxu0 0.0
    %129 = vmatpush1.msra.mxu0 0.0
    %130 = vmatprep.subr.mxu0 0.0
    %131 = vmatpush1.msra.mxu0 0.0
    %132 = vmatprep.subr.mxu0 0.0
    %133 = vmatpush1.msra.mxu0 0.0
    %134 = vmatprep.subr.mxu0 0.0
    %135 = vmatpush1.msra.mxu0 0.0
    %136 = vmatprep.subr.mxu0 0.0
    %137 = vmatpush1.msra.mxu0 0.0
    %138 = vmatprep.subr.mxu0 0.0
    %139 = vmatpush1.msra.mxu0 0.0
    %140 = vmatprep.mubr.f32.mxu0 0.0
    %141 = vmatmul.mubr.f32.gmra.mrb[0].mxu0 %v74
    %v142 = vpop.f32.mrb[0].mxu0
    %v143 = vadd.f32 %v71, %v142
    %v144 = vpop.f32.mrb[0].mxu0
    %145 = vdwg.mxu0
    %v146 = vmax.f32 %v143, 0.0
    %v147 = vld [vmem:[#allocation4] sm:$0xff]
    %v148 = vld [vmem:[#allocation4 + $0x8] sm:$0xff]
    %v149 = vld [vmem:[#allocation4 + $0x10] sm:$0xff]
    %v150 = vld [vmem:[#allocation4 + $0x18] sm:$0xff]
    %v151 = vld [vmem:[#allocation4 + $0x20] sm:$0xff]
    %v152 = vld [vmem:[#allocation4 + $0x28] sm:$0xff]
    %v153 = vld [vmem:[#allocation4 + $0x30] sm:$0xff]
    %v154 = vld [vmem:[#allocation4 + $0x38] sm:$0xff]
    %v155 = vld [vmem:[#allocation4 + $0x40] sm:$0xff]
    %v156 = vld [vmem:[#allocation4 + $0x48] sm:$0xff]
    %v157 = vld [vmem:[#allocation4 + $0x50] sm:$0xff]
    %v158 = vld [vmem:[#allocation4 + $0x58] sm:$0xff]
    %v159 = vld [vmem:[#allocation4 + $0x60] sm:$0xff]
    %v160 = vld [vmem:[#allocation4 + $0x68] sm:$0xff]
    %v161 = vld [vmem:[#allocation4 + $0x70] sm:$0xff]
    %v162 = vld [vmem:[#allocation4 + $0x78] sm:$0xff]
    %v163 = vlaneseq
    %v164 = vshrl.u32 %v163, 7
    %v165 = vsub.s32 0, %v164
    %v166 = vrot.slane %v64, %v165
    %167 = vmatprep.subr.mxu0 0.0
    %168 = vmatpush1.msra.mxu0 %v147
    %169 = vmatprep.subr.mxu0 0.0
    %170 = vmatpush1.msra.mxu0 %v148
    %171 = vmatprep.subr.mxu0 0.0
    %172 = vmatpush1.msra.mxu0 %v149
    %173 = vmatprep.subr.mxu0 0.0
    %174 = vmatpush1.msra.mxu0 %v150
    %175 = vmatprep.subr.mxu0 0.0
    %176 = vmatpush1.msra.mxu0 %v151
    %177 = vmatprep.subr.mxu0 0.0
    %178 = vmatpush1.msra.mxu0 %v152
    %179 = vmatprep.subr.mxu0 0.0
    %180 = vmatpush1.msra.mxu0 %v153
    %181 = vmatprep.subr.mxu0 0.0
    %182 = vmatpush1.msra.mxu0 %v154
    %183 = vmatprep.subr.mxu0 0.0
    %184 = vmatpush1.msra.mxu0 %v155
    %185 = vmatprep.subr.mxu0 0.0
    %186 = vmatpush1.msra.mxu0 %v156
    %187 = vmatprep.subr.mxu0 0.0
    %188 = vmatpush1.msra.mxu0 %v157
    %189 = vmatprep.subr.mxu0 0.0
    %190 = vmatpush1.msra.mxu0 %v158
    %191 = vmatprep.subr.mxu0 0.0
    %192 = vmatpush1.msra.mxu0 %v159
    %193 = vmatprep.subr.mxu0 0.0
    %194 = vmatpush1.msra.mxu0 %v160
    %195 = vmatprep.subr.mxu0 0.0
    %196 = vmatpush1.msra.mxu0 %v161
    %197 = vmatprep.subr.mxu0 0.0
    %198 = vmatpush1.msra.mxu0 %v162
    %199 = vmatprep.subr.mxu0 0.0
    %200 = vmatpush1.msra.mxu0 0.0
    %201 = vmatprep.subr.mxu0 0.0
    %202 = vmatpush1.msra.mxu0 0.0
    %203 = vmatprep.subr.mxu0 0.0
    %204 = vmatpush1.msra.mxu0 0.0
    %205 = vmatprep.subr.mxu0 0.0
    %206 = vmatpush1.msra.mxu0 0.0
    %207 = vmatprep.subr.mxu0 0.0
    %208 = vmatpush1.msra.mxu0 0.0
    %209 = vmatprep.subr.mxu0 0.0
    %210 = vmatpush1.msra.mxu0 0.0
    %211 = vmatprep.subr.mxu0 0.0
    %212 = vmatpush1.msra.mxu0 0.0
    %213 = vmatprep.subr.mxu0 0.0
    %214 = vmatpush1.msra.mxu0 0.0
    %215 = vmatprep.subr.mxu0 0.0
    %216 = vmatpush1.msra.mxu0 0.0
    %217 = vmatprep.subr.mxu0 0.0
    %218 = vmatpush1.msra.mxu0 0.0
    %219 = vmatprep.subr.mxu0 0.0
    %220 = vmatpush1.msra.mxu0 0.0
    %221 = vmatprep.subr.mxu0 0.0
    %222 = vmatpush1.msra.mxu0 0.0
    %223 = vmatprep.subr.mxu0 0.0
    %224 = vmatpush1.msra.mxu0 0.0
    %225 = vmatprep.subr.mxu0 0.0
    %226 = vmatpush1.msra.mxu0 0.0
    %227 = vmatprep.subr.mxu0 0.0
    %228 = vmatpush1.msra.mxu0 0.0
    %229 = vmatprep.subr.mxu0 0.0
    %230 = vmatpush1.msra.mxu0 0.0
    %231 = vmatprep.mubr.f32.mxu0 0.0
    %232 = vmatmul.mubr.f32.gmra.mrb[0].mxu0 %v146
    %v233 = vpop.f32.mrb[0].mxu0
    %v234 = vadd.f32 %v166, %v233
    %v235 = vpop.f32.mrb[0].mxu0
    %236 = vdwg.mxu0
    %v237 = vmax.f32 %v234, 0.0
    %v238 = vld [vmem:[#allocation6] sm:$0xff]
    %v239 = vld [vmem:[#allocation6 + $0x8] sm:$0xff]
    %v240 = vld [vmem:[#allocation6 + $0x10] sm:$0xff]
    %v241 = vld [vmem:[#allocation6 + $0x18] sm:$0xff]
    %v242 = vld [vmem:[#allocation6 + $0x20] sm:$0xff]
    %v243 = vld [vmem:[#allocation6 + $0x28] sm:$0xff]
    %v244 = vld [vmem:[#allocation6 + $0x30] sm:$0xff]
    %v245 = vld [vmem:[#allocation6 + $0x38] sm:$0xff]
    %v246 = vld [vmem:[#allocation6 + $0x40] sm:$0xff]
    %v247 = vld [vmem:[#allocation6 + $0x48] sm:$0xff]
    %v248 = vld [vmem:[#allocation6 + $0x50] sm:$0xff]
    %v249 = vld [vmem:[#allocation6 + $0x58] sm:$0xff]
    %v250 = vld [vmem:[#allocation6 + $0x60] sm:$0xff]
    %v251 = vld [vmem:[#allocation6 + $0x68] sm:$0xff]
    %v252 = vld [vmem:[#allocation6 + $0x70] sm:$0xff]
    %v253 = vld [vmem:[#allocation6 + $0x78] sm:$0xff]
    %v254 = vlaneseq
    %v255 = vshrl.u32 %v254, 7
    %v256 = vsub.s32 0, %v255
    %v257 = vrot.slane %v65, %v256
    %258 = vmatprep.subr.mxu0 0.0
    %259 = vmatpush1.msra.mxu0 %v238
    %260 = vmatprep.subr.mxu0 0.0
    %261 = vmatpush1.msra.mxu0 %v239
    %262 = vmatprep.subr.mxu0 0.0
    %263 = vmatpush1.msra.mxu0 %v240
    %264 = vmatprep.subr.mxu0 0.0
    %265 = vmatpush1.msra.mxu0 %v241
    %266 = vmatprep.subr.mxu0 0.0
    %267 = vmatpush1.msra.mxu0 %v242
    %268 = vmatprep.subr.mxu0 0.0
    %269 = vmatpush1.msra.mxu0 %v243
    %270 = vmatprep.subr.mxu0 0.0
    %271 = vmatpush1.msra.mxu0 %v244
    %272 = vmatprep.subr.mxu0 0.0
    %273 = vmatpush1.msra.mxu0 %v245
    %274 = vmatprep.subr.mxu0 0.0
    %275 = vmatpush1.msra.mxu0 %v246
    %276 = vmatprep.subr.mxu0 0.0
    %277 = vmatpush1.msra.mxu0 %v247
    %278 = vmatprep.subr.mxu0 0.0
    %279 = vmatpush1.msra.mxu0 %v248
    %280 = vmatprep.subr.mxu0 0.0
    %281 = vmatpush1.msra.mxu0 %v249
    %282 = vmatprep.subr.mxu0 0.0
    %283 = vmatpush1.msra.mxu0 %v250
    %284 = vmatprep.subr.mxu0 0.0
    %285 = vmatpush1.msra.mxu0 %v251
    %286 = vmatprep.subr.mxu0 0.0
    %287 = vmatpush1.msra.mxu0 %v252
    %288 = vmatprep.subr.mxu0 0.0
    %289 = vmatpush1.msra.mxu0 %v253
    %290 = vmatprep.subr.mxu0 0.0
    %291 = vmatpush1.msra.mxu0 0.0
    %292 = vmatprep.subr.mxu0 0.0
    %293 = vmatpush1.msra.mxu0 0.0
    %294 = vmatprep.subr.mxu0 0.0
    %295 = vmatpush1.msra.mxu0 0.0
    %296 = vmatprep.subr.mxu0 0.0
    %297 = vmatpush1.msra.mxu0 0.0
    %298 = vmatprep.subr.mxu0 0.0
    %299 = vmatpush1.msra.mxu0 0.0
    %300 = vmatprep.subr.mxu0 0.0
    %301 = vmatpush1.msra.mxu0 0.0
    %302 = vmatprep.subr.mxu0 0.0
    %303 = vmatpush1.msra.mxu0 0.0
    %304 = vmatprep.subr.mxu0 0.0
    %305 = vmatpush1.msra.mxu0 0.0
    %306 = vmatprep.subr.mxu0 0.0
    %307 = vmatpush1.msra.mxu0 0.0
    %308 = vmatprep.subr.mxu0 0.0
    %309 = vmatpush1.msra.mxu0 0.0
    %310 = vmatprep.subr.mxu0 0.0
    %311 = vmatpush1.msra.mxu0 0.0
    %312 = vmatprep.subr.mxu0 0.0
    %313 = vmatpush1.msra.mxu0 0.0
    %314 = vmatprep.subr.mxu0 0.0
    %315 = vmatpush1.msra.mxu0 0.0
    %316 = vmatprep.subr.mxu0 0.0
    %317 = vmatpush1.msra.mxu0 0.0
    %318 = vmatprep.subr.mxu0 0.0
    %319 = vmatpush1.msra.mxu0 0.0
    %320 = vmatprep.subr.mxu0 0.0
    %321 = vmatpush1.msra.mxu0 0.0
    %322 = vmatprep.mubr.f32.mxu0 0.0
    %323 = vmatmul.mubr.f32.gmra.mrb[0].mxu0 %v237
    %v324 = vpop.f32.mrb[0].mxu0
    %v325 = vadd.f32 %v257, %v324
    %v326 = vpop.f32.mrb[0].mxu0
    %327 = vdwg.mxu0
    %v328 = vlaneseq
    %v329 = vand.u32 %v328, 127
    %vm330 = vcmp.lt.s32.totalorder %v329, 8
    %v331 = vsel %vm330, %v325, -1e+30
    %332 = vmax.xlane.f32.xlu0 %v331
    %v333 = vpop.xlane.xlu0 %332
    %v334 = vsub.f32 %v331, %v333
    %v335 = vmul.f32 %v334, 1.442695
    %v336 = vpow.pop %v335
    %337 = vadd.xlane.f32.xlu0 %v336
    %v338 = vpop.xlane.xlu0 %337
    %v339 = vlog2.pop %v338
    %v340 = vmul.f32 %v339, 0.6931472
    %v341 = vmul.f32 %v336, %v334
    %v342 = vsel %vm330, %v341, 0.0
    %343 = vadd.xlane.f32.xlu0 %v342
    %v344 = vpop.xlane.xlu0 %343
    %v345 = vrcp.pop %v338
    %v346 = vmul.f32 %v344, %v345
    %v347 = vsub.f32 %v340, %v346
    %v348 = vld [vmem:[%s1] sm:$0xff]
    %349 = vset.pattern.permute.xlu0 0
    %350 = vperm.xlu0 %349, %v348
    %v351 = vpop.permute.xlu0 %350
    %vm352 = vcmp.eq.s32.totalorder %v329, %v351
    %v353 = vsel %vm352, %v334, 0.0
    %354 = vadd.xlane.f32.xlu0 %v353
    %v355 = vpop.xlane.xlu0 %354
    %v356 = vsub.f32 %v355, %v340
    %vm357 = vcmask 7168
    %358 = vst.msk [vmem:[%s6] sm:$0xff] %vm357, %v356
    %360 = vrot.lane.b32.xlu0 %v325, 121
    %v361 = vpop.permute.xlu0 %360
    %vm363 = vcmask 15368
    %364 = vst.msk [vmem:[%s6] sm:$0xff] %vm363, %v361
    %vm365 = vcmask 23568
    %366 = vst.msk [vmem:[%s6] sm:$0xff] %vm365, %v347
    %vm367 = vcmask 64536
    %368 = vst.msk [vmem:[%s6] sm:$0xff] %vm367, 0.0
    // Predicated region
    $region38: #{actor_critic_evaluate.1} parent=1 // pred_check
      _
    $region39: #{actor_critic_evaluate.1} parent=1 // pred_check_branch
      %370 = sbr.rel (0) target = $region41
    $region40: #{actor_critic_evaluate.1} parent=1 // pred_region
      _
    $region41: #{actor_critic_evaluate.1} parent=1 // pred_fallthru
      _
    // Predicated region
    $region42: #{actor_critic_evaluate.1} parent=1 // pred_check
      _
    $region43: #{actor_critic_evaluate.1} parent=1 // pred_check_branch
      %372 = sbr.rel (0) target = $region45
    $region44: #{actor_critic_evaluate.1} parent=1 // pred_region
      _
    $region45: #{actor_critic_evaluate.1} parent=1 // pred_fallthru
      _
    %373 = vsyncpa [#allocation3], 1
    %374 = vsyncpa [#allocation5], 1

</llo_original>
